<compile_context>
chip_gen: v5e
topology: v5e:2x2
jax: 0.10.0
libtpu: 0.0.40
codegen_flags: <defaults>
</compile_context>

<pallas_src>
import jax
import jax.numpy as jnp
import numpy as np
from jax import lax
from jax.experimental import pallas as pl
from jax.experimental.pallas import tpu as pltpu

# ---- model hyperparameters (mirroring the PyTorch module) ----
BLOCK_SIZE = 8          # context_length
N_EMBD = 32             # n_embd
HEAD_SIZE = N_EMBD      # Head(head_size=n_embd)
VOCAB_SIZE = 65         # len(chars) for tiny-shakespeare style vocab
V_PAD = 128             # vocab padded to a full 128-lane tile (dense stores)


def bigram_attn_kernel(idx_ref, tok_ref, pos_ref, m_ref, wvl_ref, bl_ref,
                       out_ref):
    """One grid step: BB batch rows, ids -> padded logits.

    idx_ref : (BB, T)       int32 token ids
    tok_ref : (V_PAD, C)    token-embedding table, vocab zero-padded to 128
    pos_ref : (T, C)        position-embedding table
    m_ref   : (C, C)        Wq @ Wk^T * C**-0.5   (folded attention score map)
    wvl_ref : (C, V_PAD)    Wv @ Wl, vocab zero-padded to 128
    bl_ref  : (1, V_PAD)    lm_head bias, zero-padded
    out_ref : (BB, T, V_PAD) padded logits
    """
    bb, t = idx_ref.shape
    c = tok_ref.shape[1]

    # --- in-kernel embedding gather: one-hot matmul on the MXU ---
    ids = idx_ref[...]                                            # (BB, T)
    vocab_iota = lax.broadcasted_iota(jnp.int32, (bb, t, V_PAD), 2)
    onehot = (ids[:, :, None] == vocab_iota).astype(jnp.float32)  # (BB,T,128)
    tok = jnp.dot(onehot.reshape(bb * t, V_PAD), tok_ref[...],
                  preferred_element_type=jnp.float32)             # (BB*T, C)
    x = tok.reshape(bb, t, c) + pos_ref[...][None, :, :]          # (BB, T, C)
    x2 = x.reshape(bb * t, c)

    # --- folded projections: two tall MXU matmuls ---
    s = jnp.dot(x2, m_ref[...],
                preferred_element_type=jnp.float32)               # (BB*T, C)
    u = jnp.dot(x2, wvl_ref[...],
                preferred_element_type=jnp.float32)               # (BB*T, 128)

    # wei = (x Wq)(x Wk)^T * C**-0.5  ==  (x M) x^T  (scale folded into M)
    wei = jnp.einsum('bqd,bkd->bqk', s.reshape(bb, t, c), x,
                     preferred_element_type=jnp.float32)          # (BB, T, T)

    # Causal mask built in-kernel (no tril input / DMA).  Diagonal is always
    # unmasked, so the -inf fill can never produce an all--inf softmax row.
    row = lax.broadcasted_iota(jnp.int32, (t, t), 0)
    col = lax.broadcasted_iota(jnp.int32, (t, t), 1)
    wei = jnp.where((col <= row)[None, :, :], wei, -jnp.inf)

    # Softmax in f32; the divide goes to the EUP via an approximate reciprocal.
    mx = jnp.max(wei, axis=-1, keepdims=True)
    e = jnp.exp(wei - mx)
    p = e * pl.reciprocal(jnp.sum(e, axis=-1, keepdims=True), approx=True)

    # logits = p @ (x Wv) Wl + b  ==  p @ (x Wvl) + b   -> lane-dense 128 store
    logits = jnp.einsum('bqk,bkv->bqv', p, u.reshape(bb, t, V_PAD),
                        preferred_element_type=jnp.float32)
    logits = logits + bl_ref[...][None, :, :]
    out_ref[...] = logits.astype(out_ref.dtype)


def bigram_forward(idx, params, *, block_b=256, out_dtype=jnp.float32,
                   trim=True):
    """Forward pass matching BigramLanguageModel.forward(idx, targets=None).

    trim=True  -> returns (B, T, VOCAB_SIZE) logits (exact module semantics).
    trim=False -> returns padded (B_pad, T, 128) logits (no extra HBM copy);
                  columns >= VOCAB_SIZE are exactly zero, rows >= B are padding.
    """
    B, T = idx.shape
    C, V = N_EMBD, VOCAB_SIZE

    # --- fold + lane-pad weights (tiny one-off XLA matmuls in the wrapper) ---
    m_mat = (params["wq_t"] @ params["wk_t"].T) * (C ** -0.5)       # (C, C)
    wvl = jnp.pad(params["wv_t"] @ params["wl_t"],
                  ((0, 0), (0, V_PAD - V)))                          # (C, 128)
    bl = jnp.pad(params["bl"], ((0, 0), (0, V_PAD - V)))             # (1, 128)
    tok_emb = jnp.pad(params["tok_emb"], ((0, V_PAD - V), (0, 0)))   # (128, C)
    pos_emb = params["pos_emb"][:T]                                  # (T, C)

    # --- batch chunking: BB rows per grid step ---
    # No forced grid>=2 (single-TC chips gain nothing from it); when chunking,
    # BB is rounded to a multiple of 8 so the 2-D idx block keeps the (8, ...)
    # sublane rule.  At the default BB=256 the live VMEM (in ~16 KiB, out
    # ~1 MiB per buffer, f32) is far below the v7x 32 MiB scoped limit.
    BB = max(1, min(block_b, B))
    if BB < B:
        BB = max(8, (BB // 8) * 8)
    B_pad = -(-B // BB) * BB
    idx_pad = idx.astype(jnp.int32)
    if B_pad != B:
        idx_pad = jnp.pad(idx_pad, ((0, B_pad - B), (0, 0)))

    # Note: grid-invariant weight inputs could use pipeline_mode=pl.Buffered(1)
    # to drop their unused second buffer (~30 KiB); omitted — negligible here.
    kernel = pl.pallas_call(
        bigram_attn_kernel,
        out_shape=jax.ShapeDtypeStruct((B_pad, T, V_PAD), out_dtype),
        grid_spec=pltpu.PrefetchScalarGridSpec(
            num_scalar_prefetch=0,
            grid=(B_pad // BB,),
            in_specs=[
                pl.BlockSpec((BB, T), lambda b: (b, 0)),        # token ids
                pl.BlockSpec((V_PAD, C), lambda b: (0, 0)),     # tok_emb table
                pl.BlockSpec((T, C), lambda b: (0, 0)),         # pos_emb table
                pl.BlockSpec((C, C), lambda b: (0, 0)),         # M
                pl.BlockSpec((C, V_PAD), lambda b: (0, 0)),     # Wvl
                pl.BlockSpec((1, V_PAD), lambda b: (0, 0)),     # lm_head bias
            ],
            out_specs=pl.BlockSpec((BB, T, V_PAD), lambda b: (b, 0, 0)),
        ),
        compiler_params=pltpu.CompilerParams(
            dimension_semantics=("parallel",)),
    )
    logits_pad = kernel(idx_pad, tok_emb, pos_emb, m_mat, wvl, bl)

    if trim:
        # targets=None path of the PyTorch module: loss is None
        return logits_pad[:B, :, :V], None
    return logits_pad, None


def init_params(key):
    """Deterministic parameter init (shapes match the nn.Module)."""
    ks = jax.random.split(key, 7)
    C, H, V = N_EMBD, HEAD_SIZE, VOCAB_SIZE
    # nn.Embedding ~ N(0,1); nn.Linear ~ U(-1/sqrt(in), 1/sqrt(in))
    lim = 1.0 / np.sqrt(C)
    return {
        "tok_emb": jax.random.normal(ks[0], (V, C), jnp.float32),
        "pos_emb": jax.random.normal(ks[1], (BLOCK_SIZE, C), jnp.float32),
        # stored pre-transposed: (in_features, out_features)
        "wk_t": jax.random.uniform(ks[2], (C, H), jnp.float32, -lim, lim),
        "wq_t": jax.random.uniform(ks[3], (C, H), jnp.float32, -lim, lim),
        "wv_t": jax.random.uniform(ks[4], (C, H), jnp.float32, -lim, lim),
        "wl_t": jax.random.uniform(ks[5], (C, V), jnp.float32, -lim, lim),
        "bl": jax.random.uniform(ks[6], (1, V), jnp.float32, -lim, lim),
    }


def reference_forward(idx, params):
    """Pure-JAX reference of the PyTorch forward (targets=None)."""
    B, T = idx.shape
    x = params["tok_emb"][idx] + params["pos_emb"][:T][None]
    k = x @ params["wk_t"]
    q = x @ params["wq_t"]
    v = x @ params["wv_t"]
    wei = jnp.einsum("btd,bsd->bts", q, k) * (N_EMBD ** -0.5)
    tril = jnp.tril(jnp.ones((T, T)))
    wei = jnp.where(tril[None] == 0, -jnp.inf, wei)
    wei = jax.nn.softmax(wei, axis=-1)
    out = jnp.einsum("bts,bsd->btd", wei, v)
    return out @ params["wl_t"] + params["bl"][0]


if __name__ == "__main__":
    key = jax.random.PRNGKey(0)
    params = init_params(key)

    # --- test 1: small demo shapes (B=2, T=8), f32 output, trimmed ---
    B, T = 2, BLOCK_SIZE
    idx = jax.random.randint(jax.random.PRNGKey(1), (B, T), 0, VOCAB_SIZE,
                             dtype=jnp.int32)
    logits, loss = bigram_forward(idx, params)
    logits = jax.block_until_ready(logits)
    ref = jax.block_until_ready(reference_forward(idx, params))
    # tolerance: softmax uses the EUP approx reciprocal + fp reassociation
    # from the folded weights
    np.testing.assert_allclose(np.asarray(logits), np.asarray(ref),
                               rtol=1e-2, atol=1e-2)
    assert logits.shape == (B, T, VOCAB_SIZE)
    assert loss is None

    # --- test 2: batch-chunking + padding path (grid > 1, B not mult of BB) ---
    B2 = 20
    idx2 = jax.random.randint(jax.random.PRNGKey(2), (B2, T), 0, VOCAB_SIZE,
                              dtype=jnp.int32)
    logits2, _ = bigram_forward(idx2, params, block_b=8)
    logits2 = jax.block_until_ready(logits2)
    ref2 = jax.block_until_ready(reference_forward(idx2, params))
    np.testing.assert_allclose(np.asarray(logits2), np.asarray(ref2),
                               rtol=1e-2, atol=1e-2)

    # --- test 3: untrimmed (padded) output path + bf16 writeback ---
    logits3, _ = bigram_forward(idx2, params, block_b=8, trim=False,
                                out_dtype=jnp.bfloat16)
    logits3 = jax.block_until_ready(logits3)
    assert logits3.shape[1:] == (T, V_PAD)
    np.testing.assert_allclose(
        np.asarray(logits3[:B2, :, :VOCAB_SIZE], dtype=np.float32),
        np.asarray(ref2), rtol=3e-2, atol=3e-2)
    # padded vocab columns are exactly zero (zero-padded Wvl and bias)
    np.testing.assert_array_equal(
        np.asarray(logits3[..., VOCAB_SIZE:], dtype=np.float32), 0.0)

    # TODO(synk): F.cross_entropy (targets branch) and generate()'s multinomial
    # sampling loop stay in plain JAX; only the forward pass is a kernel.
    print("KERNEL_OK")
</pallas_src>

<mosaic_0001>
module attributes {stable_mosaic.version = 11 : i64} {
  func.func @bigram_attn_kernel(%arg0: i32, %arg1: memref<2x8xi32, #tpu.memory_space<vmem>>, %arg2: memref<128x32xf32, #tpu.memory_space<vmem>>, %arg3: memref<8x32xf32, #tpu.memory_space<vmem>>, %arg4: memref<32x32xf32, #tpu.memory_space<vmem>>, %arg5: memref<32x128xf32, #tpu.memory_space<vmem>>, %arg6: memref<1x128xf32, #tpu.memory_space<vmem>>, %arg7: memref<2x8x128xf32, #tpu.memory_space<vmem>>) attributes {dimension_semantics = [#tpu.dimension_semantics<parallel>], iteration_bounds = array<i64: 1>, scalar_prefetch = 0 : i64, scratch_operands = 0 : i64, tpu.core_type = #tpu.core_type<tc>, window_params = [{transform_indices = @transform_0, window_bounds = array<i64: 2, 8>}, {pipeline_mode = #tpu.pipeline_mode<synchronous>, transform_indices = @transform_1, window_bounds = array<i64: 128, 32>}, {pipeline_mode = #tpu.pipeline_mode<synchronous>, transform_indices = @transform_2, window_bounds = array<i64: 8, 32>}, {pipeline_mode = #tpu.pipeline_mode<synchronous>, transform_indices = @transform_3, window_bounds = array<i64: 32, 32>}, {pipeline_mode = #tpu.pipeline_mode<synchronous>, transform_indices = @transform_4, window_bounds = array<i64: 32, 128>}, {pipeline_mode = #tpu.pipeline_mode<synchronous>, transform_indices = @transform_5, window_bounds = array<i64: 1, 128>}, {transform_indices = @transform_6, window_bounds = array<i64: 2, 8, 128>}]} {
    %c0 = arith.constant 0 : index
    %c0_0 = arith.constant 0 : index
    %0 = vector.load %arg1[%c0, %c0_0] : memref<2x8xi32, #tpu.memory_space<vmem>>, vector<2x8xi32>
    %1 = tpu.iota {dimensions = array<i32: 2>} : vector<2x8x128xi32>
    %2 = vector.shape_cast %0 : vector<2x8xi32> to vector<2x8x1xi32>
    %3 = vector.broadcast %2 : vector<2x8x1xi32> to vector<2x8x128xi32>
    %4 = arith.cmpi eq, %3, %1 : vector<2x8x128xi32>
    %5 = arith.extui %4 : vector<2x8x128xi1> to vector<2x8x128xi32>
    %6 = arith.sitofp %5 : vector<2x8x128xi32> to vector<2x8x128xf32>
    %7 = vector.shape_cast %6 : vector<2x8x128xf32> to vector<16x128xf32>
    %c0_1 = arith.constant 0 : index
    %c0_2 = arith.constant 0 : index
    %8 = vector.load %arg2[%c0_1, %c0_2] : memref<128x32xf32, #tpu.memory_space<vmem>>, vector<128x32xf32>
    %cst = arith.constant dense<0.000000e+00> : vector<16x32xf32>
    %9 = tpu.matmul %7, %8, %cst {dimension_numbers = #tpu.dot_dimension_numbers<[1], [0], [0], [1], [0, 0, 1, 1], [], []>} : vector<16x128xf32>, vector<128x32xf32>, vector<16x32xf32> -> vector<16x32xf32>
    %10 = vector.shape_cast %9 : vector<16x32xf32> to vector<2x8x32xf32>
    %c0_3 = arith.constant 0 : index
    %c0_4 = arith.constant 0 : index
    %11 = vector.load %arg3[%c0_3, %c0_4] : memref<8x32xf32, #tpu.memory_space<vmem>>, vector<8x32xf32>
    %12 = vector.shape_cast %11 : vector<8x32xf32> to vector<1x8x32xf32>
    %13 = vector.broadcast %12 : vector<1x8x32xf32> to vector<2x8x32xf32>
    %14 = arith.addf %10, %13 : vector<2x8x32xf32>
    %15 = vector.shape_cast %14 : vector<2x8x32xf32> to vector<16x32xf32>
    %c0_5 = arith.constant 0 : index
    %c0_6 = arith.constant 0 : index
    %16 = vector.load %arg4[%c0_5, %c0_6] : memref<32x32xf32, #tpu.memory_space<vmem>>, vector<32x32xf32>
    %cst_7 = arith.constant dense<0.000000e+00> : vector<16x32xf32>
    %17 = tpu.matmul %15, %16, %cst_7 {dimension_numbers = #tpu.dot_dimension_numbers<[1], [0], [0], [1], [0, 0, 1, 1], [], []>} : vector<16x32xf32>, vector<32x32xf32>, vector<16x32xf32> -> vector<16x32xf32>
    %c0_8 = arith.constant 0 : index
    %c0_9 = arith.constant 0 : index
    %18 = vector.load %arg5[%c0_8, %c0_9] : memref<32x128xf32, #tpu.memory_space<vmem>>, vector<32x128xf32>
    %cst_10 = arith.constant dense<0.000000e+00> : vector<16x128xf32>
    %19 = tpu.matmul %15, %18, %cst_10 {dimension_numbers = #tpu.dot_dimension_numbers<[1], [0], [0], [1], [0, 0, 1, 1], [], []>} : vector<16x32xf32>, vector<32x128xf32>, vector<16x128xf32> -> vector<16x128xf32>
    %20 = vector.shape_cast %17 : vector<16x32xf32> to vector<2x8x32xf32>
    "tpu.trace_start"() <{level = 10 : i32, message = "bqd,bkd->bqk"}> : () -> ()
    %cst_11 = arith.constant dense<0.000000e+00> : vector<2x8x8xf32>
    %21 = tpu.matmul %20, %14, %cst_11 {dimension_numbers = #tpu.dot_dimension_numbers<[2], [2], [1], [1], [0, 0, 0, 1, 1, 1], [0], [0]>} : vector<2x8x32xf32>, vector<2x8x32xf32>, vector<2x8x8xf32> -> vector<2x8x8xf32>
    "tpu.trace_stop"() : () -> ()
    %22 = tpu.iota {dimensions = array<i32: 0>} : vector<8x8xi32>
    %23 = tpu.iota {dimensions = array<i32: 1>} : vector<8x8xi32>
    %24 = arith.cmpi sle, %23, %22 : vector<8x8xi32>
    %25 = vector.shape_cast %24 : vector<8x8xi1> to vector<1x8x8xi1>
    %cst_12 = arith.constant 0xFF800000 : f32
    %26 = vector.shape_cast %25 : vector<1x8x8xi1> to vector<1x8x8xi1>
    %27 = vector.broadcast %26 : vector<1x8x8xi1> to vector<2x8x8xi1>
    %28 = vector.broadcast %cst_12 : f32 to vector<2x8x8xf32>
    %29 = arith.select %27, %21, %28 : vector<2x8x8xi1>, vector<2x8x8xf32>
    %cst_13 = arith.constant dense<0xFF800000> : vector<2x8xf32>
    %30 = vector.multi_reduction <maximumf>, %29, %cst_13 [2] : vector<2x8x8xf32> to vector<2x8xf32>
    %31 = vector.shape_cast %30 : vector<2x8xf32> to vector<2x8x1xf32>
    %32 = vector.broadcast %31 : vector<2x8x1xf32> to vector<2x8x8xf32>
    %33 = arith.subf %29, %32 : vector<2x8x8xf32>
    %34 = math.exp %33 : vector<2x8x8xf32>
    %cst_14 = arith.constant dense<0.000000e+00> : vector<2x8xf32>
    %35 = vector.multi_reduction <add>, %34, %cst_14 [2] : vector<2x8x8xf32> to vector<2x8xf32>
    %36 = vector.shape_cast %35 : vector<2x8xf32> to vector<2x8x1xf32>
    %37 = tpu.reciprocal %36 {approx = true} : vector<2x8x1xf32> -> vector<2x8x1xf32>
    %38 = vector.broadcast %37 : vector<2x8x1xf32> to vector<2x8x8xf32>
    %39 = arith.mulf %34, %38 : vector<2x8x8xf32>
    %40 = vector.shape_cast %19 : vector<16x128xf32> to vector<2x8x128xf32>
    "tpu.trace_start"() <{level = 10 : i32, message = "bqk,bkv->bqv"}> : () -> ()
    %cst_15 = arith.constant dense<0.000000e+00> : vector<2x8x128xf32>
    %41 = tpu.matmul %39, %40, %cst_15 {dimension_numbers = #tpu.dot_dimension_numbers<[2], [1], [1], [2], [0, 0, 0, 1, 1, 2], [0], [0]>} : vector<2x8x8xf32>, vector<2x8x128xf32>, vector<2x8x128xf32> -> vector<2x8x128xf32>
    "tpu.trace_stop"() : () -> ()
    %c0_16 = arith.constant 0 : index
    %c0_17 = arith.constant 0 : index
    %42 = vector.load %arg6[%c0_16, %c0_17] : memref<1x128xf32, #tpu.memory_space<vmem>>, vector<1x128xf32>
    %43 = vector.shape_cast %42 : vector<1x128xf32> to vector<1x1x128xf32>
    %44 = vector.broadcast %43 : vector<1x1x128xf32> to vector<2x8x128xf32>
    %45 = arith.addf %41, %44 : vector<2x8x128xf32>
    %c0_18 = arith.constant 0 : index
    %c0_19 = arith.constant 0 : index
    %c0_20 = arith.constant 0 : index
    %46 = vector.load %arg7[%c0_18, %c0_19, %c0_20] : memref<2x8x128xf32, #tpu.memory_space<vmem>>, vector<2x8x128xf32>
    tpu.vector_store %arg7[%c0_18, %c0_19, %c0_20], %45 {strides = array<i32>} : memref<2x8x128xf32, #tpu.memory_space<vmem>>, vector<2x8x128xf32>,
    return
  }
  func.func @transform_0(%arg0: i32) -> (i32, i32) {
    %c0_i32 = arith.constant 0 : i32
    %c0_i32_0 = arith.constant 0 : i32
    return %arg0, %c0_i32 : i32, i32
  }
  func.func @transform_1(%arg0: i32) -> (i32, i32) {
    %c0_i32 = arith.constant 0 : i32
    %c0_i32_0 = arith.constant 0 : i32
    %c0_i32_1 = arith.constant 0 : i32
    return %c0_i32, %c0_i32_0 : i32, i32
  }
  func.func @transform_2(%arg0: i32) -> (i32, i32) {
    %c0_i32 = arith.constant 0 : i32
    %c0_i32_0 = arith.constant 0 : i32
    %c0_i32_1 = arith.constant 0 : i32
    return %c0_i32, %c0_i32_0 : i32, i32
  }
  func.func @transform_3(%arg0: i32) -> (i32, i32) {
    %c0_i32 = arith.constant 0 : i32
    %c0_i32_0 = arith.constant 0 : i32
    %c0_i32_1 = arith.constant 0 : i32
    return %c0_i32, %c0_i32_0 : i32, i32
  }
  func.func @transform_4(%arg0: i32) -> (i32, i32) {
    %c0_i32 = arith.constant 0 : i32
    %c0_i32_0 = arith.constant 0 : i32
    %c0_i32_1 = arith.constant 0 : i32
    return %c0_i32, %c0_i32_0 : i32, i32
  }
  func.func @transform_5(%arg0: i32) -> (i32, i32) {
    %c0_i32 = arith.constant 0 : i32
    %c0_i32_0 = arith.constant 0 : i32
    %c0_i32_1 = arith.constant 0 : i32
    return %c0_i32, %c0_i32_0 : i32, i32
  }
  func.func @transform_6(%arg0: i32) -> (i32, i32, i32) {
    %c0_i32 = arith.constant 0 : i32
    %c0_i32_0 = arith.constant 0 : i32
    %c0_i32_1 = arith.constant 0 : i32
    return %arg0, %c0_i32, %c0_i32_0 : i32, i32, i32
  }
}

</mosaic_0001>

<llo_original>
// kernel: tpu_custom_call.1
$region0: #{tpu_custom_call.1}
  #allocation0 [shape = 'u32[]', space=smem, size = 0x4, offset = 0x4, fixed_abs, tag = 'smem constant byte address 0x4 - core index']
  #allocation1 [shape = 'u32[72,128]{1,0:T(1,128)}', space=vmem, size = 0x9000, scoped, tag = 'internal scratch']
  %s0 = inlined_call_operand.vmem [shape: s32[2,8], index: 0, kind: input, shape index: {}]
  %s1 = inlined_call_operand.vmem [shape: f32[128,32], index: 1, kind: input, shape index: {}]
  %s2 = inlined_call_operand.vmem [shape: f32[8,32], index: 2, kind: input, shape index: {}]
  %s3 = inlined_call_operand.vmem [shape: f32[32,32], index: 3, kind: input, shape index: {}]
  %s4 = inlined_call_operand.vmem [shape: f32[32,128], index: 4, kind: input, shape index: {}]
  %s5 = inlined_call_operand.vmem [shape: f32[1,128], index: 5, kind: input, shape index: {}]
  %s6 = inlined_call_operand.hbm [shape: f32[2,8,128], index: 6, kind: output, shape index: {}]
  %s7 = sld [smem:[#allocation0]]
  $region34: #{tpu_custom_call.1} parent=0
    _
  %s9 = ssub.s32 1, %s7
  %s10 = scalar_select 0, %s9, %s7
  $region1: #{tpu_custom_call.1} parent=0
    #allocation2 [shape = 'u8[8192]{0}', space=vmem, size = 0x2000, scoped, tag = 'output window, operand 0, single buffered']
    #allocation3 [shape = 's32[1]{0}', space=sflag, size = 0x4, scoped, tag = 'scoped memory for tpu_custom_call.1']
    %11 = vsyncpa [#allocation3], 0
    // Predicated region
    $region2: #{tpu_custom_call.1} parent=1 // pred_check
      _
    $region3: #{tpu_custom_call.1} parent=1 // pred_check_branch
      %13 = sbr.rel (0) target = $region5
    $region4: #{tpu_custom_call.1} parent=1 // pred_region
      _
    $region5: #{tpu_custom_call.1} parent=1 // pred_fallthru
      _
    // Predicated region
    $region6: #{tpu_custom_call.1} parent=1 // pred_check
      _
    $region7: #{tpu_custom_call.1} parent=1 // pred_check_branch
      %15 = sbr.rel (0) target = $region9
    $region8: #{tpu_custom_call.1} parent=1 // pred_region
      _
    $region9: #{tpu_custom_call.1} parent=1 // pred_fallthru
      _
    // Predicated region
    $region10: #{tpu_custom_call.1} parent=1 // pred_check
      _
    $region11: #{tpu_custom_call.1} parent=1 // pred_check_branch
      %17 = sbr.rel (0) target = $region13
    $region12: #{tpu_custom_call.1} parent=1 // pred_region
      _
    $region13: #{tpu_custom_call.1} parent=1 // pred_fallthru
      _
    // Predicated region
    $region14: #{tpu_custom_call.1} parent=1 // pred_check
      _
    $region15: #{tpu_custom_call.1} parent=1 // pred_check_branch
      %19 = sbr.rel (0) target = $region17
    $region16: #{tpu_custom_call.1} parent=1 // pred_region
      _
    $region17: #{tpu_custom_call.1} parent=1 // pred_fallthru
      _
    // Predicated region
    $region18: #{tpu_custom_call.1} parent=1 // pred_check
      _
    $region19: #{tpu_custom_call.1} parent=1 // pred_check_branch
      %21 = sbr.rel (0) target = $region21
    $region20: #{tpu_custom_call.1} parent=1 // pred_region
      _
    $region21: #{tpu_custom_call.1} parent=1 // pred_fallthru
      _
    // Predicated region
    $region22: #{tpu_custom_call.1} parent=1 // pred_check
      _
    $region23: #{tpu_custom_call.1} parent=1 // pred_check_branch
      %23 = sbr.rel (0) target = $region25
    $region24: #{tpu_custom_call.1} parent=1 // pred_region
      _
    $region25: #{tpu_custom_call.1} parent=1 // pred_fallthru
      _
    %v24 = vld [vmem:[%s0] sm:$0x3]
    %v25 = vlaneseq
    %v26 = vand.u32 %v25, 127
    %v27 = vperm.slane %v24, 0
    %v28 = vlaneseq
    %v29 = vshrl.u32 %v28, 7
    %31 = vset.pattern.permute.xlu0 %v29
    %32 = vperm.xlu0 %31, %v27
    %v33 = vpop.permute.xlu0 %32
    %v34 = vperm.slane %v24, 1
    %v35 = vlaneseq
    %v36 = vshrl.u32 %v35, 7
    %38 = vset.pattern.permute.xlu0 %v36
    %39 = vperm.xlu0 %38, %v34
    %v40 = vpop.permute.xlu0 %39
    %vm41 = vcmp.eq.s32.totalorder %v33, %v26
    %vm42 = vcmp.eq.s32.totalorder %v40, %v26
    %v43 = vsel %vm41, 1, 0
    %v44 = vsel %vm42, 1, 0
    %v45 = vcvt.s32.f32 %v43
    %v46 = vcvt.s32.f32 %v44
    %v47 = vld [vmem:[%s1] sm:$0xff]
    %v48 = vld [vmem:[%s1 + $0x8] sm:$0xff]
    %v49 = vld [vmem:[%s1 + $0x10] sm:$0xff]
    %v50 = vld [vmem:[%s1 + $0x18] sm:$0xff]
    %v51 = vld [vmem:[%s1 + $0x20] sm:$0xff]
    %v52 = vld [vmem:[%s1 + $0x28] sm:$0xff]
    %v53 = vld [vmem:[%s1 + $0x30] sm:$0xff]
    %v54 = vld [vmem:[%s1 + $0x38] sm:$0xff]
    %v55 = vld [vmem:[%s1 + $0x40] sm:$0xff]
    %v56 = vld [vmem:[%s1 + $0x48] sm:$0xff]
    %v57 = vld [vmem:[%s1 + $0x50] sm:$0xff]
    %v58 = vld [vmem:[%s1 + $0x58] sm:$0xff]
    %v59 = vld [vmem:[%s1 + $0x60] sm:$0xff]
    %v60 = vld [vmem:[%s1 + $0x68] sm:$0xff]
    %v61 = vld [vmem:[%s1 + $0x70] sm:$0xff]
    %v62 = vld [vmem:[%s1 + $0x78] sm:$0xff]
    %63 = vmatpush.msra.mxu0 %v62
    %64 = vmatpush.msra.mxu0 %v61
    %65 = vmatpush.msra.mxu0 %v60
    %66 = vmatpush.msra.mxu0 %v59
    %67 = vmatpush.msra.mxu0 %v58
    %68 = vmatpush.msra.mxu0 %v57
    %69 = vmatpush.msra.mxu0 %v56
    %70 = vmatpush.msra.mxu0 %v55
    %71 = vmatpush.msra.mxu0 %v54
    %72 = vmatpush.msra.mxu0 %v53
    %73 = vmatpush.msra.mxu0 %v52
    %74 = vmatpush.msra.mxu0 %v51
    %75 = vmatpush.msra.mxu0 %v50
    %76 = vmatpush.msra.mxu0 %v49
    %77 = vmatpush.msra.mxu0 %v48
    %78 = vmatpush.msra.mxu0 %v47
    %79 = vmatmul.f32.gmra.mxu0 %v45
    %v80 = vpop.f32.mrf.mxu0
    %v81 = vadd.f32 0.0, %v80
    %82 = vmatmul.f32.gmra.mxu0 %v46
    %v83 = vpop.f32.mrf.mxu0
    %v84 = vadd.f32 0.0, %v83
    %85 = vdwg.mxu0
    %v86 = vld [vmem:[%s2] sm:$0xff]
    %v87 = vadd.f32 %v81, %v86
    %v88 = vadd.f32 %v84, %v86
    %v89 = vld [vmem:[%s3] sm:$0xff]
    %v90 = vld [vmem:[%s3 + $0x8] sm:$0xff]
    %v91 = vld [vmem:[%s3 + $0x10] sm:$0xff]
    %v92 = vld [vmem:[%s3 + $0x18] sm:$0xff]
    %vm93 = vcmask 261120
    %v95 = vsel %vm93, %v87, 0
    %v98 = vsel %vm93, %v88, 0
    %100 = vmatpush.msra.mxu0 0.0
    %101 = vmatpush.msra.mxu0 0.0
    %102 = vmatpush.msra.mxu0 0.0
    %103 = vmatpush.msra.mxu0 0.0
    %104 = vmatpush.msra.mxu0 0.0
    %105 = vmatpush.msra.mxu0 0.0
    %106 = vmatpush.msra.mxu0 0.0
    %107 = vmatpush.msra.mxu0 0.0
    %108 = vmatpush.msra.mxu0 0.0
    %109 = vmatpush.msra.mxu0 0.0
    %110 = vmatpush.msra.mxu0 0.0
    %111 = vmatpush.msra.mxu0 0.0
    %112 = vmatpush.msra.mxu0 %v92
    %113 = vmatpush.msra.mxu0 %v91
    %114 = vmatpush.msra.mxu0 %v90
    %115 = vmatpush.msra.mxu0 %v89
    %116 = vmatmul.f32.gmra.mxu0 %v95
    %v117 = vpop.f32.mrf.mxu0
    %v118 = vadd.f32 0.0, %v117
    %119 = vmatmul.f32.gmra.mxu0 %v98
    %v120 = vpop.f32.mrf.mxu0
    %v121 = vadd.f32 0.0, %v120
    %122 = vdwg.mxu0
    %v123 = vld [vmem:[%s4] sm:$0xff]
    %v124 = vld [vmem:[%s4 + $0x8] sm:$0xff]
    %v125 = vld [vmem:[%s4 + $0x10] sm:$0xff]
    %v126 = vld [vmem:[%s4 + $0x18] sm:$0xff]
    %127 = vmatpush.msra.mxu0 0.0
    %128 = vmatpush.msra.mxu0 0.0
    %129 = vmatpush.msra.mxu0 0.0
    %130 = vmatpush.msra.mxu0 0.0
    %131 = vmatpush.msra.mxu0 0.0
    %132 = vmatpush.msra.mxu0 0.0
    %133 = vmatpush.msra.mxu0 0.0
    %134 = vmatpush.msra.mxu0 0.0
    %135 = vmatpush.msra.mxu0 0.0
    %136 = vmatpush.msra.mxu0 0.0
    %137 = vmatpush.msra.mxu0 0.0
    %138 = vmatpush.msra.mxu0 0.0
    %139 = vmatpush.msra.mxu0 %v126
    %140 = vmatpush.msra.mxu0 %v125
    %141 = vmatpush.msra.mxu0 %v124
    %142 = vmatpush.msra.mxu0 %v123
    %143 = vmatmul.f32.gmra.mxu0 %v95
    %v144 = vpop.f32.mrf.mxu0
    %v145 = vadd.f32 0.0, %v144
    %146 = vmatmul.f32.gmra.mxu0 %v98
    %v147 = vpop.f32.mrf.mxu0
    %v148 = vadd.f32 0.0, %v147
    %149 = vdwg.mxu0
    %v151 = vsel %vm93, %v118, 0
    %153 = vmatpush.xpose.msra.mxu0 0.0
    %154 = vmatpush.xpose.msra.mxu0 0.0
    %155 = vmatpush.xpose.msra.mxu0 0.0
    %156 = vmatpush.xpose.msra.mxu0 0.0
    %157 = vmatpush.xpose.msra.mxu0 0.0
    %158 = vmatpush.xpose.msra.mxu0 0.0
    %159 = vmatpush.xpose.msra.mxu0 0.0
    %160 = vmatpush.xpose.msra.mxu0 0.0
    %161 = vmatpush.xpose.msra.mxu0 0.0
    %162 = vmatpush.xpose.msra.mxu0 0.0
    %163 = vmatpush.xpose.msra.mxu0 0.0
    %164 = vmatpush.xpose.msra.mxu0 0.0
    %165 = vmatpush.xpose.msra.mxu0 0.0
    %166 = vmatpush.xpose.msra.mxu0 0.0
    %167 = vmatpush.xpose.msra.mxu0 0.0
    %168 = vmatpush.xpose.msra.mxu0 %v95
    %169 = vmatmul.f32.gmra.mxu0 %v151
    %v170 = vpop.f32.mrf.mxu0
    %v171 = vadd.f32 0.0, %v170
    %172 = vdwg.mxu0
    %v174 = vsel %vm93, %v121, 0
    %176 = vmatpush.xpose.msra.mxu0 0.0
    %177 = vmatpush.xpose.msra.mxu0 0.0
    %178 = vmatpush.xpose.msra.mxu0 0.0
    %179 = vmatpush.xpose.msra.mxu0 0.0
    %180 = vmatpush.xpose.msra.mxu0 0.0
    %181 = vmatpush.xpose.msra.mxu0 0.0
    %182 = vmatpush.xpose.msra.mxu0 0.0
    %183 = vmatpush.xpose.msra.mxu0 0.0
    %184 = vmatpush.xpose.msra.mxu0 0.0
    %185 = vmatpush.xpose.msra.mxu0 0.0
    %186 = vmatpush.xpose.msra.mxu0 0.0
    %187 = vmatpush.xpose.msra.mxu0 0.0
    %188 = vmatpush.xpose.msra.mxu0 0.0
    %189 = vmatpush.xpose.msra.mxu0 0.0
    %190 = vmatpush.xpose.msra.mxu0 0.0
    %191 = vmatpush.xpose.msra.mxu0 %v98
    %192 = vmatmul.f32.gmra.mxu0 %v174
    %v193 = vpop.f32.mrf.mxu0
    %v194 = vadd.f32 0.0, %v193
    %195 = vdwg.mxu0
    %v196 = vlaneseq
    %v197 = vshrl.u32 %v196, 7
    %vm198 = vcmp.le.s32.totalorder %v26, %v197
    %v199 = vsel %vm198, 1, 0
    %vm200 = vcmp.eq.s32.totalorder %v199, 1
    %v201 = vsel %vm200, %v171, -inf
    %v202 = vsel %vm200, %v194, -inf
    %vm203 = vcmask 64512
    %v204 = vsel %vm203, %v201, -inf
    %205 = vmax.xlane.f32.xlu0 %v204
    %v206 = vpop.xlane.xlu0 %205
    %v207 = vsel %vm203, %v202, -inf
    %208 = vmax.xlane.f32.xlu0 %v207
    %v209 = vpop.xlane.xlu0 %208
    %v210 = vsub.f32 %v201, %v206
    %v211 = vsub.f32 %v202, %v209
    %v212 = vmul.f32 %v210, 1.442695
    %v213 = vpow.pop %v212
    %v214 = vmul.f32 %v211, 1.442695
    %v215 = vpow.pop %v214
    %v216 = vsel %vm203, %v213, 0.0
    %217 = vadd.xlane.f32.xlu0 %v216
    %v218 = vpop.xlane.xlu0 %217
    %v219 = vsel %vm203, %v215, 0.0
    %220 = vadd.xlane.f32.xlu0 %v219
    %v221 = vpop.xlane.xlu0 %220
    %v222 = vrcp.pop %v218
    %v223 = vrcp.pop %v221
    %v224 = vmul.f32 %v213, %v222
    %v225 = vmul.f32 %v215, %v223
    %v226 = vld [vmem:[%s5] sm:$0x1]
    %v228 = vperm.slane %v226, 0
    %v231 = vsel %vm203, %v224, 0
    %233 = vmatpush.msra.mxu0 0.0
    %234 = vmatpush.msra.mxu0 0.0
    %235 = vmatpush.msra.mxu0 0.0
    %236 = vmatpush.msra.mxu0 0.0
    %237 = vmatpush.msra.mxu0 0.0
    %238 = vmatpush.msra.mxu0 0.0
    %239 = vmatpush.msra.mxu0 0.0
    %240 = vmatpush.msra.mxu0 0.0
    %241 = vmatpush.msra.mxu0 0.0
    %242 = vmatpush.msra.mxu0 0.0
    %243 = vmatpush.msra.mxu0 0.0
    %244 = vmatpush.msra.mxu0 0.0
    %245 = vmatpush.msra.mxu0 0.0
    %246 = vmatpush.msra.mxu0 0.0
    %247 = vmatpush.msra.mxu0 0.0
    %248 = vmatpush.msra.mxu0 %v145
    %249 = vmatmul.f32.gmra.mxu0 %v231
    %v250 = vpop.f32.mrf.mxu0
    %v251 = vadd.f32 %v228, %v250
    %252 = vdwg.mxu0
    %v254 = vsel %vm203, %v225, 0
    %256 = vmatpush.msra.mxu0 0.0
    %257 = vmatpush.msra.mxu0 0.0
    %258 = vmatpush.msra.mxu0 0.0
    %259 = vmatpush.msra.mxu0 0.0
    %260 = vmatpush.msra.mxu0 0.0
    %261 = vmatpush.msra.mxu0 0.0
    %262 = vmatpush.msra.mxu0 0.0
    %263 = vmatpush.msra.mxu0 0.0
    %264 = vmatpush.msra.mxu0 0.0
    %265 = vmatpush.msra.mxu0 0.0
    %266 = vmatpush.msra.mxu0 0.0
    %267 = vmatpush.msra.mxu0 0.0
    %268 = vmatpush.msra.mxu0 0.0
    %269 = vmatpush.msra.mxu0 0.0
    %270 = vmatpush.msra.mxu0 0.0
    %271 = vmatpush.msra.mxu0 %v148
    %272 = vmatmul.f32.gmra.mxu0 %v254
    %v273 = vpop.f32.mrf.mxu0
    %v274 = vadd.f32 %v228, %v273
    %275 = vdwg.mxu0
    %276 = vst [vmem:[#allocation2] sm:$0xff] %v251
    %277 = vst [vmem:[#allocation2 + $0x8] sm:$0xff] %v274
    // Predicated region
    $region26: #{tpu_custom_call.1} parent=1 // pred_check
      _
    $region27: #{tpu_custom_call.1} parent=1 // pred_check_branch
      %279 = sbr.rel (0) target = $region29
    $region28: #{tpu_custom_call.1} parent=1 // pred_region
      %281 = vsyncadd [#allocation3], 0
      %s282 = sshll.u32 [#allocation2], 4
      %s283 = int_to_ptr.vmem [resolvable:$true] %s282
      %s284 = sshll.u32 %s6, 4
      %s285 = int_to_ptr.hbm [resolvable:$true] %s284
      %290 = dma.vmem_to_hbm [thread:$0]  %s283, 256, %s285, [#allocation3], 128, 128, 8
    $region29: #{tpu_custom_call.1} parent=1 // pred_fallthru
      _
    // Predicated region
    $region30: #{tpu_custom_call.1} parent=1 // pred_check
      _
    $region31: #{tpu_custom_call.1} parent=1 // pred_check_branch
      %292 = sbr.rel (0) target = $region33
    $region32: #{tpu_custom_call.1} parent=1 // pred_region
      %294 = dma.done [#allocation3], 256
    $region33: #{tpu_custom_call.1} parent=1 // pred_fallthru
      _
    %295 = vsyncpa [#allocation3], 1

</llo_original>
